<compile_context>
chip_gen: v5e
topology: v5e:2x2
jax: 0.10.0
libtpu: 0.0.40
codegen_flags: <defaults>
</compile_context>

<pallas_src>
import functools

import jax
import jax.numpy as jnp
from jax.experimental import pallas as pl
from jax.experimental.pallas import tpu as pltpu

# ---- module hyper-parameters (GNN_drug(drug_layer, drug_output_dim, drug_hidden_dim, gnn='GIN')) ----
LAYERS = 3          # drug_layer
HIDDEN = 32         # drug_hidden_dim
HIDDEN2 = 2 * HIDDEN
DRUG_DIM = 64       # drug_output_dim
BN_EPS = 1e-5       # torch.nn.BatchNorm1d default eps

H_PAD = 128         # lane-dense padded hidden width (covers H, 2H and DRUG_DIM)

NUM_ATOM_FEATS = 9  # OGB AtomEncoder feature columns
NUM_BOND_FEATS = 3  # OGB BondEncoder feature columns
ATOM_VOCAB = 16
BOND_VOCAB = 8


def gnn_drug_kernel(x_ref, adj_ref, pool_ref, w_ref, v_ref, out_ref):
    """Whole forward hot-path in one invocation (grid=()).

    x_ref    : [N, 128]            encoded atoms, lanes >= HIDDEN are zero
    adj_ref  : [N, N]              dense adjacency with self-loops + identity fold
    pool_ref : [G_pad, N]          mean-pool matrix (padded graph rows are zero)
    w_ref    : [2L+1, 128, 128]    W[l]=w1_l, W[L+l]=w2_l, W[2L]=drug_emb weight
    v_ref    : [L+1, 8, 128]       V[l] rows: 0=b1, 1=b2, 2=gamma, 3=beta; V[L][0]=drug_emb bias
    out_ref  : [G_pad, 128]        padded output slab (valid part: [:G, :DRUG_DIM])
    """
    x = x_ref[...]
    adj = adj_ref[...]

    for l in range(LAYERS):  # static unroll
        # GINConv (eps=0) with self-loops: 2*x_i + sum(neighbors), done as ONE
        # MXU matmul because the identity was folded into adj on the host.
        agg = jnp.dot(adj, x, preferred_element_type=jnp.float32)
        vecs = v_ref[l]                                           # [8, 128]
        # GIN MLP block: Linear(H, 2H) -> ReLU -> Linear(2H, H)
        h = jnp.dot(agg, w_ref[l], preferred_element_type=jnp.float32) + vecs[0:1]
        h = jnp.maximum(h, 0.0)
        h = jnp.dot(h, w_ref[LAYERS + l], preferred_element_type=jnp.float32) + vecs[1:2]
        # x = bn(relu(x)) -- BatchNorm1d, training-mode batch stats (biased var)
        h = jnp.maximum(h, 0.0)
        mean = jnp.mean(h, axis=0, keepdims=True)
        var = jnp.mean((h - mean) * (h - mean), axis=0, keepdims=True)
        x = vecs[2:3] * (h - mean) * jax.lax.rsqrt(var + BN_EPS) + vecs[3:4]
        # F.dropout -> identity (inference)

    # global_mean_pool: [G_pad, N] @ [N, 128] -> [G_pad, 128]
    pooled = jnp.dot(pool_ref[...], x, preferred_element_type=jnp.float32)
    # drug_emb: Linear(H, DRUG_DIM) -> ReLU -> Dropout(identity)
    out = jnp.dot(pooled, w_ref[2 * LAYERS], preferred_element_type=jnp.float32) + v_ref[LAYERS][0:1]
    out_ref[...] = jnp.maximum(out, 0.0)


def init_params(key):
    ks = jax.random.split(key, 8)
    p = {}
    # OGB-style encoders: one embedding table per feature column, summed.
    p["atom_emb"] = jax.random.normal(ks[0], (NUM_ATOM_FEATS, ATOM_VOCAB, HIDDEN), jnp.float32) * 0.1
    p["bond_emb"] = jax.random.normal(ks[1], (NUM_BOND_FEATS, BOND_VOCAB, HIDDEN), jnp.float32) * 0.1
    # GIN MLP blocks, stacked over layers.
    p["w1"] = jax.random.normal(ks[2], (LAYERS, HIDDEN, HIDDEN2), jnp.float32) * 0.1
    p["b1"] = jax.random.normal(ks[3], (LAYERS, HIDDEN2), jnp.float32) * 0.01
    p["w2"] = jax.random.normal(ks[4], (LAYERS, HIDDEN2, HIDDEN), jnp.float32) * 0.1
    p["b2"] = jax.random.normal(ks[5], (LAYERS, HIDDEN), jnp.float32) * 0.01
    # BatchNorm1d affine params (gamma=1, beta=0 as in torch default init).
    p["gamma"] = jnp.ones((LAYERS, HIDDEN), jnp.float32)
    p["beta"] = jnp.zeros((LAYERS, HIDDEN), jnp.float32)
    # drug_emb Linear(H, DRUG_DIM)
    p["we"] = jax.random.normal(ks[6], (HIDDEN, DRUG_DIM), jnp.float32) * 0.1
    p["be"] = jax.random.normal(ks[7], (DRUG_DIM,), jnp.float32) * 0.01
    return p


def pack_params(p):
    """Coalesce all kernel parameters into two lane-dense padded slabs."""
    W = jnp.zeros((2 * LAYERS + 1, H_PAD, H_PAD), jnp.float32)
    W = W.at[0:LAYERS, :HIDDEN, :HIDDEN2].set(p["w1"])
    W = W.at[LAYERS:2 * LAYERS, :HIDDEN2, :HIDDEN].set(p["w2"])
    W = W.at[2 * LAYERS, :HIDDEN, :DRUG_DIM].set(p["we"])

    V = jnp.zeros((LAYERS + 1, 8, H_PAD), jnp.float32)
    V = V.at[:LAYERS, 0, :HIDDEN2].set(p["b1"])
    V = V.at[:LAYERS, 1, :HIDDEN].set(p["b2"])
    V = V.at[:LAYERS, 2, :HIDDEN].set(p["gamma"])
    V = V.at[:LAYERS, 3, :HIDDEN].set(p["beta"])
    V = V.at[LAYERS, 0, :DRUG_DIM].set(p["be"])
    return W, V


@functools.partial(jax.jit, static_argnames=("num_graphs",))
def gnn_drug_forward(params, x_int, edge_index, edge_attr, batch, num_graphs):
    N = x_int.shape[0]

    # ---- glue: add_self_loops on edge_index, self-loop bond attrs ----
    loop = jnp.arange(N, dtype=edge_index.dtype)
    src = jnp.concatenate([edge_index[0], loop])
    dst = jnp.concatenate([edge_index[1], loop])
    self_loop_attr = jnp.zeros((N, NUM_BOND_FEATS), edge_attr.dtype).at[:, 0].set(4)
    edge_attr_full = jnp.concatenate([edge_attr, self_loop_attr], axis=0)

    # ---- glue: atom encoder (embedding-sum), lane-padded to H_PAD ----
    x_enc = jnp.zeros((N, H_PAD), jnp.float32)
    for f in range(NUM_ATOM_FEATS):
        x_enc = x_enc.at[:, :HIDDEN].add(params["atom_emb"][f][x_int[:, f]])

    # ---- glue: bond encoder (computed for parity; unused in the GIN path) ----
    edge_enc = jnp.zeros((edge_attr_full.shape[0], HIDDEN), jnp.float32)
    for f in range(NUM_BOND_FEATS):
        edge_enc = edge_enc + params["bond_emb"][f][edge_attr_full[:, f]]
    edge_enc = edge_enc + x_enc[src, :HIDDEN]  # matches `edge_attr += x[edge_index[0]]`
    del edge_enc  # unused for the non-CMPNN (GIN) path, same as the original forward

    # ---- glue: dense adjacency (dst, src) with self-loops; fold GIN's explicit '+x'
    # (eps=0) into the adjacency by adding the identity -> single matmul per layer.
    adj = jnp.zeros((N, N), jnp.float32).at[dst, src].add(1.0)
    adj_plus = adj + jnp.eye(N, dtype=jnp.float32)

    # ---- glue: mean-pool matrix, graph axis padded to a sublane multiple ----
    G_pad = max(8, ((num_graphs + 7) // 8) * 8)
    g_ids = jnp.arange(G_pad, dtype=batch.dtype)
    onehot = (batch[None, :] == g_ids[:, None]).astype(jnp.float32)      # [G_pad, N]
    counts = jnp.maximum(jnp.sum(onehot, axis=1, keepdims=True), 1.0)
    pool = onehot / counts

    W, V = pack_params(params)

    vmem = pl.BlockSpec(memory_space=pltpu.MemorySpace.VMEM)
    fn = pl.pallas_call(
        gnn_drug_kernel,
        out_shape=jax.ShapeDtypeStruct((G_pad, H_PAD), jnp.float32),
        in_specs=[vmem] * 5,
        out_specs=vmem,
        compiler_params=pltpu.CompilerParams(vmem_limit_bytes=64 << 20),
    )
    out_pad = fn(x_enc, adj_plus, pool, W, V)
    return out_pad[:num_graphs, :DRUG_DIM]


if __name__ == "__main__":
    key = jax.random.PRNGKey(0)
    k_param, k_x, k_src, k_dst, k_ea = jax.random.split(key, 5)

    N = 16            # nodes
    E = 24            # directed edges (before self-loops)
    G = 2             # graphs in the batch

    params = init_params(k_param)

    # synthetic `drug` batch: categorical atom features, edge list, bond feats, graph ids
    x_int = jax.random.randint(k_x, (N, NUM_ATOM_FEATS), 0, ATOM_VOCAB, dtype=jnp.int32)
    edge_index = jnp.stack([
        jax.random.randint(k_src, (E,), 0, N, dtype=jnp.int32),
        jax.random.randint(k_dst, (E,), 0, N, dtype=jnp.int32),
    ])
    edge_attr = jax.random.randint(k_ea, (E, NUM_BOND_FEATS), 0, BOND_VOCAB, dtype=jnp.int32)
    batch = jnp.concatenate([jnp.zeros((N // 2,), jnp.int32),
                             jnp.ones((N - N // 2,), jnp.int32)])

    out = gnn_drug_forward(params, x_int, edge_index, edge_attr, batch, G)
    out = jax.block_until_ready(out)
    assert out.shape == (G, DRUG_DIM) and out.dtype == jnp.float32
    assert bool(jnp.all(jnp.isfinite(out)))
    print("KERNEL_OK")
</pallas_src>

<mosaic_0001>
module attributes {stable_mosaic.version = 11 : i64} {
  func.func @gnn_drug_kernel(%arg0: memref<16x128xf32, #tpu.memory_space<vmem>>, %arg1: memref<16x16xf32, #tpu.memory_space<vmem>>, %arg2: memref<8x16xf32, #tpu.memory_space<vmem>>, %arg3: memref<7x128x128xf32, #tpu.memory_space<vmem>>, %arg4: memref<4x8x128xf32, #tpu.memory_space<vmem>>, %arg5: memref<8x128xf32, #tpu.memory_space<vmem>>) attributes {dimension_semantics = [], scalar_prefetch = 0 : i64, scratch_operands = 0 : i64, tpu.core_type = #tpu.core_type<tc>} {
    %c0 = arith.constant 0 : index
    %c0_0 = arith.constant 0 : index
    %0 = vector.load %arg0[%c0, %c0_0] : memref<16x128xf32, #tpu.memory_space<vmem>>, vector<16x128xf32>
    %c0_1 = arith.constant 0 : index
    %c0_2 = arith.constant 0 : index
    %1 = vector.load %arg1[%c0_1, %c0_2] : memref<16x16xf32, #tpu.memory_space<vmem>>, vector<16x16xf32>
    %cst = arith.constant dense<0.000000e+00> : vector<16x128xf32>
    %2 = tpu.matmul %1, %0, %cst {dimension_numbers = #tpu.dot_dimension_numbers<[1], [0], [0], [1], [0, 0, 1, 1], [], []>} : vector<16x16xf32>, vector<16x128xf32>, vector<16x128xf32> -> vector<16x128xf32>
    %c0_3 = arith.constant 0 : index
    %c0_4 = arith.constant 0 : index
    %c0_5 = arith.constant 0 : index
    %3 = vector.load %arg4[%c0_3, %c0_4, %c0_5] : memref<4x8x128xf32, #tpu.memory_space<vmem>>, vector<1x8x128xf32>
    %4 = vector.shape_cast %3 : vector<1x8x128xf32> to vector<8x128xf32>
    %c0_6 = arith.constant 0 : index
    %c0_7 = arith.constant 0 : index
    %c0_8 = arith.constant 0 : index
    %5 = vector.load %arg3[%c0_6, %c0_7, %c0_8] : memref<7x128x128xf32, #tpu.memory_space<vmem>>, vector<1x128x128xf32>
    %6 = vector.shape_cast %5 : vector<1x128x128xf32> to vector<128x128xf32>
    %cst_9 = arith.constant dense<0.000000e+00> : vector<16x128xf32>
    %7 = tpu.matmul %2, %6, %cst_9 {dimension_numbers = #tpu.dot_dimension_numbers<[1], [0], [0], [1], [0, 0, 1, 1], [], []>} : vector<16x128xf32>, vector<128x128xf32>, vector<16x128xf32> -> vector<16x128xf32>
    %8 = vector.extract_strided_slice %4 {offsets = [0, 0], sizes = [1, 128], strides = [1, 1]} : vector<8x128xf32> to vector<1x128xf32>
    %9 = vector.broadcast %8 : vector<1x128xf32> to vector<16x128xf32>
    %10 = arith.addf %7, %9 : vector<16x128xf32>
    %cst_10 = arith.constant 0.000000e+00 : f32
    %11 = vector.broadcast %cst_10 : f32 to vector<16x128xf32>
    %12 = arith.maximumf %10, %11 : vector<16x128xf32>
    %c3 = arith.constant 3 : index
    %c0_11 = arith.constant 0 : index
    %c0_12 = arith.constant 0 : index
    %13 = vector.load %arg3[%c3, %c0_11, %c0_12] : memref<7x128x128xf32, #tpu.memory_space<vmem>>, vector<1x128x128xf32>
    %14 = vector.shape_cast %13 : vector<1x128x128xf32> to vector<128x128xf32>
    %cst_13 = arith.constant dense<0.000000e+00> : vector<16x128xf32>
    %15 = tpu.matmul %12, %14, %cst_13 {dimension_numbers = #tpu.dot_dimension_numbers<[1], [0], [0], [1], [0, 0, 1, 1], [], []>} : vector<16x128xf32>, vector<128x128xf32>, vector<16x128xf32> -> vector<16x128xf32>
    %16 = vector.extract_strided_slice %4 {offsets = [1, 0], sizes = [1, 128], strides = [1, 1]} : vector<8x128xf32> to vector<1x128xf32>
    %17 = vector.broadcast %16 : vector<1x128xf32> to vector<16x128xf32>
    %18 = arith.addf %15, %17 : vector<16x128xf32>
    %cst_14 = arith.constant 0.000000e+00 : f32
    %19 = vector.broadcast %cst_14 : f32 to vector<16x128xf32>
    %20 = arith.maximumf %18, %19 : vector<16x128xf32>
    %cst_15 = arith.constant dense<0.000000e+00> : vector<128xf32>
    %21 = vector.multi_reduction <add>, %20, %cst_15 [0] : vector<16x128xf32> to vector<128xf32>
    %22 = vector.shape_cast %21 : vector<128xf32> to vector<1x128xf32>
    %cst_16 = arith.constant 1.600000e+01 : f32
    %23 = vector.broadcast %cst_16 : f32 to vector<1x128xf32>
    %24 = arith.divf %22, %23 : vector<1x128xf32>
    %25 = vector.broadcast %24 : vector<1x128xf32> to vector<16x128xf32>
    %26 = arith.subf %20, %25 : vector<16x128xf32>
    %27 = vector.broadcast %24 : vector<1x128xf32> to vector<16x128xf32>
    %28 = arith.subf %20, %27 : vector<16x128xf32>
    %29 = arith.mulf %26, %28 : vector<16x128xf32>
    %cst_17 = arith.constant dense<0.000000e+00> : vector<128xf32>
    %30 = vector.multi_reduction <add>, %29, %cst_17 [0] : vector<16x128xf32> to vector<128xf32>
    %31 = vector.shape_cast %30 : vector<128xf32> to vector<1x128xf32>
    %cst_18 = arith.constant 1.600000e+01 : f32
    %32 = vector.broadcast %cst_18 : f32 to vector<1x128xf32>
    %33 = arith.divf %31, %32 : vector<1x128xf32>
    %34 = vector.extract_strided_slice %4 {offsets = [2, 0], sizes = [1, 128], strides = [1, 1]} : vector<8x128xf32> to vector<1x128xf32>
    %35 = vector.broadcast %24 : vector<1x128xf32> to vector<16x128xf32>
    %36 = arith.subf %20, %35 : vector<16x128xf32>
    %37 = vector.broadcast %34 : vector<1x128xf32> to vector<16x128xf32>
    %38 = arith.mulf %37, %36 : vector<16x128xf32>
    %cst_19 = arith.constant 9.99999974E-6 : f32
    %39 = vector.broadcast %cst_19 : f32 to vector<1x128xf32>
    %40 = arith.addf %33, %39 : vector<1x128xf32>
    %41 = math.rsqrt %40 : vector<1x128xf32>
    %42 = vector.broadcast %41 : vector<1x128xf32> to vector<16x128xf32>
    %43 = arith.mulf %38, %42 : vector<16x128xf32>
    %44 = vector.extract_strided_slice %4 {offsets = [3, 0], sizes = [1, 128], strides = [1, 1]} : vector<8x128xf32> to vector<1x128xf32>
    %45 = vector.broadcast %44 : vector<1x128xf32> to vector<16x128xf32>
    %46 = arith.addf %43, %45 : vector<16x128xf32>
    %cst_20 = arith.constant dense<0.000000e+00> : vector<16x128xf32>
    %47 = tpu.matmul %1, %46, %cst_20 {dimension_numbers = #tpu.dot_dimension_numbers<[1], [0], [0], [1], [0, 0, 1, 1], [], []>} : vector<16x16xf32>, vector<16x128xf32>, vector<16x128xf32> -> vector<16x128xf32>
    %c1 = arith.constant 1 : index
    %c0_21 = arith.constant 0 : index
    %c0_22 = arith.constant 0 : index
    %48 = vector.load %arg4[%c1, %c0_21, %c0_22] : memref<4x8x128xf32, #tpu.memory_space<vmem>>, vector<1x8x128xf32>
    %49 = vector.shape_cast %48 : vector<1x8x128xf32> to vector<8x128xf32>
    %c1_23 = arith.constant 1 : index
    %c0_24 = arith.constant 0 : index
    %c0_25 = arith.constant 0 : index
    %50 = vector.load %arg3[%c1_23, %c0_24, %c0_25] : memref<7x128x128xf32, #tpu.memory_space<vmem>>, vector<1x128x128xf32>
    %51 = vector.shape_cast %50 : vector<1x128x128xf32> to vector<128x128xf32>
    %cst_26 = arith.constant dense<0.000000e+00> : vector<16x128xf32>
    %52 = tpu.matmul %47, %51, %cst_26 {dimension_numbers = #tpu.dot_dimension_numbers<[1], [0], [0], [1], [0, 0, 1, 1], [], []>} : vector<16x128xf32>, vector<128x128xf32>, vector<16x128xf32> -> vector<16x128xf32>
    %53 = vector.extract_strided_slice %49 {offsets = [0, 0], sizes = [1, 128], strides = [1, 1]} : vector<8x128xf32> to vector<1x128xf32>
    %54 = vector.broadcast %53 : vector<1x128xf32> to vector<16x128xf32>
    %55 = arith.addf %52, %54 : vector<16x128xf32>
    %cst_27 = arith.constant 0.000000e+00 : f32
    %56 = vector.broadcast %cst_27 : f32 to vector<16x128xf32>
    %57 = arith.maximumf %55, %56 : vector<16x128xf32>
    %c4 = arith.constant 4 : index
    %c0_28 = arith.constant 0 : index
    %c0_29 = arith.constant 0 : index
    %58 = vector.load %arg3[%c4, %c0_28, %c0_29] : memref<7x128x128xf32, #tpu.memory_space<vmem>>, vector<1x128x128xf32>
    %59 = vector.shape_cast %58 : vector<1x128x128xf32> to vector<128x128xf32>
    %cst_30 = arith.constant dense<0.000000e+00> : vector<16x128xf32>
    %60 = tpu.matmul %57, %59, %cst_30 {dimension_numbers = #tpu.dot_dimension_numbers<[1], [0], [0], [1], [0, 0, 1, 1], [], []>} : vector<16x128xf32>, vector<128x128xf32>, vector<16x128xf32> -> vector<16x128xf32>
    %61 = vector.extract_strided_slice %49 {offsets = [1, 0], sizes = [1, 128], strides = [1, 1]} : vector<8x128xf32> to vector<1x128xf32>
    %62 = vector.broadcast %61 : vector<1x128xf32> to vector<16x128xf32>
    %63 = arith.addf %60, %62 : vector<16x128xf32>
    %cst_31 = arith.constant 0.000000e+00 : f32
    %64 = vector.broadcast %cst_31 : f32 to vector<16x128xf32>
    %65 = arith.maximumf %63, %64 : vector<16x128xf32>
    %cst_32 = arith.constant dense<0.000000e+00> : vector<128xf32>
    %66 = vector.multi_reduction <add>, %65, %cst_32 [0] : vector<16x128xf32> to vector<128xf32>
    %67 = vector.shape_cast %66 : vector<128xf32> to vector<1x128xf32>
    %cst_33 = arith.constant 1.600000e+01 : f32
    %68 = vector.broadcast %cst_33 : f32 to vector<1x128xf32>
    %69 = arith.divf %67, %68 : vector<1x128xf32>
    %70 = vector.broadcast %69 : vector<1x128xf32> to vector<16x128xf32>
    %71 = arith.subf %65, %70 : vector<16x128xf32>
    %72 = vector.broadcast %69 : vector<1x128xf32> to vector<16x128xf32>
    %73 = arith.subf %65, %72 : vector<16x128xf32>
    %74 = arith.mulf %71, %73 : vector<16x128xf32>
    %cst_34 = arith.constant dense<0.000000e+00> : vector<128xf32>
    %75 = vector.multi_reduction <add>, %74, %cst_34 [0] : vector<16x128xf32> to vector<128xf32>
    %76 = vector.shape_cast %75 : vector<128xf32> to vector<1x128xf32>
    %cst_35 = arith.constant 1.600000e+01 : f32
    %77 = vector.broadcast %cst_35 : f32 to vector<1x128xf32>
    %78 = arith.divf %76, %77 : vector<1x128xf32>
    %79 = vector.extract_strided_slice %49 {offsets = [2, 0], sizes = [1, 128], strides = [1, 1]} : vector<8x128xf32> to vector<1x128xf32>
    %80 = vector.broadcast %69 : vector<1x128xf32> to vector<16x128xf32>
    %81 = arith.subf %65, %80 : vector<16x128xf32>
    %82 = vector.broadcast %79 : vector<1x128xf32> to vector<16x128xf32>
    %83 = arith.mulf %82, %81 : vector<16x128xf32>
    %cst_36 = arith.constant 9.99999974E-6 : f32
    %84 = vector.broadcast %cst_36 : f32 to vector<1x128xf32>
    %85 = arith.addf %78, %84 : vector<1x128xf32>
    %86 = math.rsqrt %85 : vector<1x128xf32>
    %87 = vector.broadcast %86 : vector<1x128xf32> to vector<16x128xf32>
    %88 = arith.mulf %83, %87 : vector<16x128xf32>
    %89 = vector.extract_strided_slice %49 {offsets = [3, 0], sizes = [1, 128], strides = [1, 1]} : vector<8x128xf32> to vector<1x128xf32>
    %90 = vector.broadcast %89 : vector<1x128xf32> to vector<16x128xf32>
    %91 = arith.addf %88, %90 : vector<16x128xf32>
    %cst_37 = arith.constant dense<0.000000e+00> : vector<16x128xf32>
    %92 = tpu.matmul %1, %91, %cst_37 {dimension_numbers = #tpu.dot_dimension_numbers<[1], [0], [0], [1], [0, 0, 1, 1], [], []>} : vector<16x16xf32>, vector<16x128xf32>, vector<16x128xf32> -> vector<16x128xf32>
    %c2 = arith.constant 2 : index
    %c0_38 = arith.constant 0 : index
    %c0_39 = arith.constant 0 : index
    %93 = vector.load %arg4[%c2, %c0_38, %c0_39] : memref<4x8x128xf32, #tpu.memory_space<vmem>>, vector<1x8x128xf32>
    %94 = vector.shape_cast %93 : vector<1x8x128xf32> to vector<8x128xf32>
    %c2_40 = arith.constant 2 : index
    %c0_41 = arith.constant 0 : index
    %c0_42 = arith.constant 0 : index
    %95 = vector.load %arg3[%c2_40, %c0_41, %c0_42] : memref<7x128x128xf32, #tpu.memory_space<vmem>>, vector<1x128x128xf32>
    %96 = vector.shape_cast %95 : vector<1x128x128xf32> to vector<128x128xf32>
    %cst_43 = arith.constant dense<0.000000e+00> : vector<16x128xf32>
    %97 = tpu.matmul %92, %96, %cst_43 {dimension_numbers = #tpu.dot_dimension_numbers<[1], [0], [0], [1], [0, 0, 1, 1], [], []>} : vector<16x128xf32>, vector<128x128xf32>, vector<16x128xf32> -> vector<16x128xf32>
    %98 = vector.extract_strided_slice %94 {offsets = [0, 0], sizes = [1, 128], strides = [1, 1]} : vector<8x128xf32> to vector<1x128xf32>
    %99 = vector.broadcast %98 : vector<1x128xf32> to vector<16x128xf32>
    %100 = arith.addf %97, %99 : vector<16x128xf32>
    %cst_44 = arith.constant 0.000000e+00 : f32
    %101 = vector.broadcast %cst_44 : f32 to vector<16x128xf32>
    %102 = arith.maximumf %100, %101 : vector<16x128xf32>
    %c5 = arith.constant 5 : index
    %c0_45 = arith.constant 0 : index
    %c0_46 = arith.constant 0 : index
    %103 = vector.load %arg3[%c5, %c0_45, %c0_46] : memref<7x128x128xf32, #tpu.memory_space<vmem>>, vector<1x128x128xf32>
    %104 = vector.shape_cast %103 : vector<1x128x128xf32> to vector<128x128xf32>
    %cst_47 = arith.constant dense<0.000000e+00> : vector<16x128xf32>
    %105 = tpu.matmul %102, %104, %cst_47 {dimension_numbers = #tpu.dot_dimension_numbers<[1], [0], [0], [1], [0, 0, 1, 1], [], []>} : vector<16x128xf32>, vector<128x128xf32>, vector<16x128xf32> -> vector<16x128xf32>
    %106 = vector.extract_strided_slice %94 {offsets = [1, 0], sizes = [1, 128], strides = [1, 1]} : vector<8x128xf32> to vector<1x128xf32>
    %107 = vector.broadcast %106 : vector<1x128xf32> to vector<16x128xf32>
    %108 = arith.addf %105, %107 : vector<16x128xf32>
    %cst_48 = arith.constant 0.000000e+00 : f32
    %109 = vector.broadcast %cst_48 : f32 to vector<16x128xf32>
    %110 = arith.maximumf %108, %109 : vector<16x128xf32>
    %cst_49 = arith.constant dense<0.000000e+00> : vector<128xf32>
    %111 = vector.multi_reduction <add>, %110, %cst_49 [0] : vector<16x128xf32> to vector<128xf32>
    %112 = vector.shape_cast %111 : vector<128xf32> to vector<1x128xf32>
    %cst_50 = arith.constant 1.600000e+01 : f32
    %113 = vector.broadcast %cst_50 : f32 to vector<1x128xf32>
    %114 = arith.divf %112, %113 : vector<1x128xf32>
    %115 = vector.broadcast %114 : vector<1x128xf32> to vector<16x128xf32>
    %116 = arith.subf %110, %115 : vector<16x128xf32>
    %117 = vector.broadcast %114 : vector<1x128xf32> to vector<16x128xf32>
    %118 = arith.subf %110, %117 : vector<16x128xf32>
    %119 = arith.mulf %116, %118 : vector<16x128xf32>
    %cst_51 = arith.constant dense<0.000000e+00> : vector<128xf32>
    %120 = vector.multi_reduction <add>, %119, %cst_51 [0] : vector<16x128xf32> to vector<128xf32>
    %121 = vector.shape_cast %120 : vector<128xf32> to vector<1x128xf32>
    %cst_52 = arith.constant 1.600000e+01 : f32
    %122 = vector.broadcast %cst_52 : f32 to vector<1x128xf32>
    %123 = arith.divf %121, %122 : vector<1x128xf32>
    %124 = vector.extract_strided_slice %94 {offsets = [2, 0], sizes = [1, 128], strides = [1, 1]} : vector<8x128xf32> to vector<1x128xf32>
    %125 = vector.broadcast %114 : vector<1x128xf32> to vector<16x128xf32>
    %126 = arith.subf %110, %125 : vector<16x128xf32>
    %127 = vector.broadcast %124 : vector<1x128xf32> to vector<16x128xf32>
    %128 = arith.mulf %127, %126 : vector<16x128xf32>
    %cst_53 = arith.constant 9.99999974E-6 : f32
    %129 = vector.broadcast %cst_53 : f32 to vector<1x128xf32>
    %130 = arith.addf %123, %129 : vector<1x128xf32>
    %131 = math.rsqrt %130 : vector<1x128xf32>
    %132 = vector.broadcast %131 : vector<1x128xf32> to vector<16x128xf32>
    %133 = arith.mulf %128, %132 : vector<16x128xf32>
    %134 = vector.extract_strided_slice %94 {offsets = [3, 0], sizes = [1, 128], strides = [1, 1]} : vector<8x128xf32> to vector<1x128xf32>
    %135 = vector.broadcast %134 : vector<1x128xf32> to vector<16x128xf32>
    %136 = arith.addf %133, %135 : vector<16x128xf32>
    %c0_54 = arith.constant 0 : index
    %c0_55 = arith.constant 0 : index
    %137 = vector.load %arg2[%c0_54, %c0_55] : memref<8x16xf32, #tpu.memory_space<vmem>>, vector<8x16xf32>
    %cst_56 = arith.constant dense<0.000000e+00> : vector<8x128xf32>
    %138 = tpu.matmul %137, %136, %cst_56 {dimension_numbers = #tpu.dot_dimension_numbers<[1], [0], [0], [1], [0, 0, 1, 1], [], []>} : vector<8x16xf32>, vector<16x128xf32>, vector<8x128xf32> -> vector<8x128xf32>
    %c6 = arith.constant 6 : index
    %c0_57 = arith.constant 0 : index
    %c0_58 = arith.constant 0 : index
    %139 = vector.load %arg3[%c6, %c0_57, %c0_58] : memref<7x128x128xf32, #tpu.memory_space<vmem>>, vector<1x128x128xf32>
    %140 = vector.shape_cast %139 : vector<1x128x128xf32> to vector<128x128xf32>
    %cst_59 = arith.constant dense<0.000000e+00> : vector<8x128xf32>
    %141 = tpu.matmul %138, %140, %cst_59 {dimension_numbers = #tpu.dot_dimension_numbers<[1], [0], [0], [1], [0, 0, 1, 1], [], []>} : vector<8x128xf32>, vector<128x128xf32>, vector<8x128xf32> -> vector<8x128xf32>
    %c3_60 = arith.constant 3 : index
    %c0_61 = arith.constant 0 : index
    %c0_62 = arith.constant 0 : index
    %142 = vector.load %arg4[%c3_60, %c0_61, %c0_62] : memref<4x8x128xf32, #tpu.memory_space<vmem>>, vector<1x8x128xf32>
    %143 = vector.shape_cast %142 : vector<1x8x128xf32> to vector<8x128xf32>
    %144 = vector.extract_strided_slice %143 {offsets = [0, 0], sizes = [1, 128], strides = [1, 1]} : vector<8x128xf32> to vector<1x128xf32>
    %145 = vector.broadcast %144 : vector<1x128xf32> to vector<8x128xf32>
    %146 = arith.addf %141, %145 : vector<8x128xf32>
    %cst_63 = arith.constant 0.000000e+00 : f32
    %147 = vector.broadcast %cst_63 : f32 to vector<8x128xf32>
    %148 = arith.maximumf %146, %147 : vector<8x128xf32>
    %c0_64 = arith.constant 0 : index
    %c0_65 = arith.constant 0 : index
    %149 = vector.load %arg5[%c0_64, %c0_65] : memref<8x128xf32, #tpu.memory_space<vmem>>, vector<8x128xf32>
    tpu.vector_store %arg5[%c0_64, %c0_65], %148 {strides = array<i32>} : memref<8x128xf32, #tpu.memory_space<vmem>>, vector<8x128xf32>,
    return
  }
}

</mosaic_0001>

<llo_original>
// kernel: gnn_drug_forward.1
$region0: #{gnn_drug_forward.1}
  #allocation0 [shape = 'u32[]', space=smem, size = 0x4, offset = 0x4, fixed_abs, tag = 'smem constant byte address 0x4 - core index']
  #allocation1 [shape = 'u32[72,128]{1,0:T(1,128)}', space=vmem, size = 0x9000, scoped, tag = 'internal scratch']
  %s0 = inlined_call_operand.vmem [shape: f32[16,128], index: 0, kind: input, shape index: {}]
  %s1 = inlined_call_operand.vmem [shape: f32[16,16], index: 1, kind: input, shape index: {}]
  %s2 = inlined_call_operand.vmem [shape: f32[8,16], index: 2, kind: input, shape index: {}]
  %s3 = inlined_call_operand.vmem [shape: f32[7,128,128], index: 3, kind: input, shape index: {}]
  %s4 = inlined_call_operand.vmem [shape: f32[4,8,128], index: 4, kind: input, shape index: {}]
  %s5 = inlined_call_operand.vmem [shape: f32[8,128], index: 5, kind: output, shape index: {}]
  %s6 = sld [smem:[#allocation0]]
  $region30: #{gnn_drug_forward.1} parent=0
    _
  %s8 = ssub.s32 1, %s6
  %s9 = scalar_select 0, %s8, %s6
  // Predicated region
  $region2: #{gnn_drug_forward.1} parent=0 // pred_check
    _
  $region3: #{gnn_drug_forward.1} parent=0 // pred_check_branch
    %11 = sbr.rel (0) target = $region5
  $region4: #{gnn_drug_forward.1} parent=0 // pred_region
    _
  $region5: #{gnn_drug_forward.1} parent=0 // pred_fallthru
    _
  // Predicated region
  $region6: #{gnn_drug_forward.1} parent=0 // pred_check
    _
  $region7: #{gnn_drug_forward.1} parent=0 // pred_check_branch
    %13 = sbr.rel (0) target = $region9
  $region8: #{gnn_drug_forward.1} parent=0 // pred_region
    _
  $region9: #{gnn_drug_forward.1} parent=0 // pred_fallthru
    _
  // Predicated region
  $region10: #{gnn_drug_forward.1} parent=0 // pred_check
    _
  $region11: #{gnn_drug_forward.1} parent=0 // pred_check_branch
    %15 = sbr.rel (0) target = $region13
  $region12: #{gnn_drug_forward.1} parent=0 // pred_region
    _
  $region13: #{gnn_drug_forward.1} parent=0 // pred_fallthru
    _
  // Predicated region
  $region14: #{gnn_drug_forward.1} parent=0 // pred_check
    _
  $region15: #{gnn_drug_forward.1} parent=0 // pred_check_branch
    %17 = sbr.rel (0) target = $region17
  $region16: #{gnn_drug_forward.1} parent=0 // pred_region
    _
  $region17: #{gnn_drug_forward.1} parent=0 // pred_fallthru
    _
  // Predicated region
  $region18: #{gnn_drug_forward.1} parent=0 // pred_check
    _
  $region19: #{gnn_drug_forward.1} parent=0 // pred_check_branch
    %19 = sbr.rel (0) target = $region21
  $region20: #{gnn_drug_forward.1} parent=0 // pred_region
    _
  $region21: #{gnn_drug_forward.1} parent=0 // pred_fallthru
    _
  %v20 = vld [vmem:[%s0] sm:$0xff]
  %v21 = vld [vmem:[%s0 + $0x8] sm:$0xff]
  %v22 = vld [vmem:[%s1] sm:$0xff]
  %v23 = vld [vmem:[%s1 + $0x8] sm:$0xff]
  %vm24 = vcmask 130048
  %v26 = vsel %vm24, %v22, 0
  %v29 = vsel %vm24, %v23, 0
  %31 = vmatpush.msra.mxu0 0.0
  %32 = vmatpush.msra.mxu0 0.0
  %33 = vmatpush.msra.mxu0 0.0
  %34 = vmatpush.msra.mxu0 0.0
  %35 = vmatpush.msra.mxu0 0.0
  %36 = vmatpush.msra.mxu0 0.0
  %37 = vmatpush.msra.mxu0 0.0
  %38 = vmatpush.msra.mxu0 0.0
  %39 = vmatpush.msra.mxu0 0.0
  %40 = vmatpush.msra.mxu0 0.0
  %41 = vmatpush.msra.mxu0 0.0
  %42 = vmatpush.msra.mxu0 0.0
  %43 = vmatpush.msra.mxu0 0.0
  %44 = vmatpush.msra.mxu0 0.0
  %45 = vmatpush.msra.mxu0 %v21
  %46 = vmatpush.msra.mxu0 %v20
  %47 = vmatmul.f32.gmra.mxu0 %v26
  %v48 = vpop.f32.mrf.mxu0
  %v49 = vadd.f32 0.0, %v48
  %50 = vmatmul.f32.gmra.mxu0 %v29
  %v51 = vpop.f32.mrf.mxu0
  %v52 = vadd.f32 0.0, %v51
  %53 = vdwg.mxu0
  %v54 = vld [vmem:[%s4] sm:$0xff]
  %v55 = vld [vmem:[%s3] sm:$0xff]
  %v56 = vld [vmem:[%s3 + $0x8] sm:$0xff]
  %v57 = vld [vmem:[%s3 + $0x10] sm:$0xff]
  %v58 = vld [vmem:[%s3 + $0x18] sm:$0xff]
  %v59 = vld [vmem:[%s3 + $0x20] sm:$0xff]
  %v60 = vld [vmem:[%s3 + $0x28] sm:$0xff]
  %v61 = vld [vmem:[%s3 + $0x30] sm:$0xff]
  %v62 = vld [vmem:[%s3 + $0x38] sm:$0xff]
  %v63 = vld [vmem:[%s3 + $0x40] sm:$0xff]
  %v64 = vld [vmem:[%s3 + $0x48] sm:$0xff]
  %v65 = vld [vmem:[%s3 + $0x50] sm:$0xff]
  %v66 = vld [vmem:[%s3 + $0x58] sm:$0xff]
  %v67 = vld [vmem:[%s3 + $0x60] sm:$0xff]
  %v68 = vld [vmem:[%s3 + $0x68] sm:$0xff]
  %v69 = vld [vmem:[%s3 + $0x70] sm:$0xff]
  %v70 = vld [vmem:[%s3 + $0x78] sm:$0xff]
  %v71 = vperm.slane %v54, 0
  %72 = vmatpush.msra.mxu0 %v70
  %73 = vmatpush.msra.mxu0 %v69
  %74 = vmatpush.msra.mxu0 %v68
  %75 = vmatpush.msra.mxu0 %v67
  %76 = vmatpush.msra.mxu0 %v66
  %77 = vmatpush.msra.mxu0 %v65
  %78 = vmatpush.msra.mxu0 %v64
  %79 = vmatpush.msra.mxu0 %v63
  %80 = vmatpush.msra.mxu0 %v62
  %81 = vmatpush.msra.mxu0 %v61
  %82 = vmatpush.msra.mxu0 %v60
  %83 = vmatpush.msra.mxu0 %v59
  %84 = vmatpush.msra.mxu0 %v58
  %85 = vmatpush.msra.mxu0 %v57
  %86 = vmatpush.msra.mxu0 %v56
  %87 = vmatpush.msra.mxu0 %v55
  %88 = vmatmul.f32.gmra.mxu0 %v49
  %v89 = vpop.f32.mrf.mxu0
  %v90 = vadd.f32 %v71, %v89
  %91 = vmatmul.f32.gmra.mxu0 %v52
  %v92 = vpop.f32.mrf.mxu0
  %v93 = vadd.f32 %v71, %v92
  %94 = vdwg.mxu0
  %v95 = vmax.f32 %v90, 0.0
  %v96 = vmax.f32 %v93, 0.0
  %s97 = scalar_lea.vmem %s3, 384
  %v98 = vld [vmem:[%s97] sm:$0xff]
  %v99 = vld [vmem:[%s97 + $0x8] sm:$0xff]
  %v100 = vld [vmem:[%s97 + $0x10] sm:$0xff]
  %v101 = vld [vmem:[%s97 + $0x18] sm:$0xff]
  %v102 = vld [vmem:[%s97 + $0x20] sm:$0xff]
  %v103 = vld [vmem:[%s97 + $0x28] sm:$0xff]
  %v104 = vld [vmem:[%s97 + $0x30] sm:$0xff]
  %v105 = vld [vmem:[%s97 + $0x38] sm:$0xff]
  %v106 = vld [vmem:[%s97 + $0x40] sm:$0xff]
  %v107 = vld [vmem:[%s97 + $0x48] sm:$0xff]
  %v108 = vld [vmem:[%s97 + $0x50] sm:$0xff]
  %v109 = vld [vmem:[%s97 + $0x58] sm:$0xff]
  %v110 = vld [vmem:[%s97 + $0x60] sm:$0xff]
  %v111 = vld [vmem:[%s97 + $0x68] sm:$0xff]
  %v112 = vld [vmem:[%s97 + $0x70] sm:$0xff]
  %v113 = vld [vmem:[%s97 + $0x78] sm:$0xff]
  %v114 = vperm.slane %v54, 1
  %115 = vmatpush.msra.mxu0 %v113
  %116 = vmatpush.msra.mxu0 %v112
  %117 = vmatpush.msra.mxu0 %v111
  %118 = vmatpush.msra.mxu0 %v110
  %119 = vmatpush.msra.mxu0 %v109
  %120 = vmatpush.msra.mxu0 %v108
  %121 = vmatpush.msra.mxu0 %v107
  %122 = vmatpush.msra.mxu0 %v106
  %123 = vmatpush.msra.mxu0 %v105
  %124 = vmatpush.msra.mxu0 %v104
  %125 = vmatpush.msra.mxu0 %v103
  %126 = vmatpush.msra.mxu0 %v102
  %127 = vmatpush.msra.mxu0 %v101
  %128 = vmatpush.msra.mxu0 %v100
  %129 = vmatpush.msra.mxu0 %v99
  %130 = vmatpush.msra.mxu0 %v98
  %131 = vmatmul.f32.gmra.mxu0 %v95
  %v132 = vpop.f32.mrf.mxu0
  %v133 = vadd.f32 %v114, %v132
  %134 = vmatmul.f32.gmra.mxu0 %v96
  %v135 = vpop.f32.mrf.mxu0
  %v136 = vadd.f32 %v114, %v135
  %137 = vdwg.mxu0
  %v138 = vmax.f32 %v133, 0.0
  %v139 = vmax.f32 %v136, 0.0
  %v140 = vadd.f32 %v138, %v139
  %v141 = vrot.slane %v140, 4
  %v142 = vadd.f32 %v140, %v141
  %v143 = vrot.slane %v142, 2
  %v144 = vadd.f32 %v142, %v143
  %v145 = vrot.slane %v144, 1
  %v146 = vadd.f32 %v144, %v145
  %v147 = vrcp.pop 16.0
  %v148 = vmul.f32 16.0, %v147
  %v149 = vsub.f32 1.0, %v148
  %v150 = vmul.f32 %v147, %v149
  %v151 = vadd.f32 %v147, %v150
  %vm152 = vweird.f32 %v147
  %v153 = vsel %vm152, %v147, %v151
  %v154 = vmul.f32 %v146, %v153
  %v155 = vsub.f32 %v138, %v154
  %v156 = vsub.f32 %v139, %v154
  %v157 = vmul.f32 %v155, %v155
  %v158 = vmul.f32 %v156, %v156
  %v159 = vadd.f32 %v157, %v158
  %v160 = vrot.slane %v159, 4
  %v161 = vadd.f32 %v159, %v160
  %v162 = vrot.slane %v161, 2
  %v163 = vadd.f32 %v161, %v162
  %v164 = vrot.slane %v163, 1
  %v165 = vadd.f32 %v163, %v164
  %v166 = vmul.f32 %v165, %v153
  %v167 = vperm.slane %v54, 2
  %v168 = vmul.f32 %v167, %v155
  %v169 = vmul.f32 %v167, %v156
  %v170 = vadd.f32 %v166, 1e-05
  %v171 = vrsqrt.pop %v170
  %v172 = vmul.f32 %v171, %v170
  %v173 = vmul.f32 %v172, %v171
  %v174 = vmul.f32 0.5, %v173
  %v175 = vsub.f32 1.5, %v174
  %v176 = vmul.f32 %v171, %v175
  %vm177 = vweird.f32 %v170
  %vm178 = vweird.f32 %v171
  %vm179 = vmor %vm177, %vm178
  %v180 = vsel %vm179, %v171, %v176
  %v181 = vmul.f32 %v168, %v180
  %v182 = vmul.f32 %v169, %v180
  %v183 = vperm.slane %v54, 3
  %v184 = vadd.f32 %v181, %v183
  %v185 = vadd.f32 %v182, %v183
  %186 = vmatpush.msra.mxu0 0.0
  %187 = vmatpush.msra.mxu0 0.0
  %188 = vmatpush.msra.mxu0 0.0
  %189 = vmatpush.msra.mxu0 0.0
  %190 = vmatpush.msra.mxu0 0.0
  %191 = vmatpush.msra.mxu0 0.0
  %192 = vmatpush.msra.mxu0 0.0
  %193 = vmatpush.msra.mxu0 0.0
  %194 = vmatpush.msra.mxu0 0.0
  %195 = vmatpush.msra.mxu0 0.0
  %196 = vmatpush.msra.mxu0 0.0
  %197 = vmatpush.msra.mxu0 0.0
  %198 = vmatpush.msra.mxu0 0.0
  %199 = vmatpush.msra.mxu0 0.0
  %200 = vmatpush.msra.mxu0 %v185
  %201 = vmatpush.msra.mxu0 %v184
  %202 = vmatmul.f32.gmra.mxu0 %v26
  %v203 = vpop.f32.mrf.mxu0
  %v204 = vadd.f32 0.0, %v203
  %205 = vmatmul.f32.gmra.mxu0 %v29
  %v206 = vpop.f32.mrf.mxu0
  %v207 = vadd.f32 0.0, %v206
  %208 = vdwg.mxu0
  %s209 = scalar_lea.vmem %s4, 8
  %v210 = vld [vmem:[%s209] sm:$0xff]
  %s211 = scalar_lea.vmem %s3, 128
  %v212 = vld [vmem:[%s211] sm:$0xff]
  %v213 = vld [vmem:[%s211 + $0x8] sm:$0xff]
  %v214 = vld [vmem:[%s211 + $0x10] sm:$0xff]
  %v215 = vld [vmem:[%s211 + $0x18] sm:$0xff]
  %v216 = vld [vmem:[%s211 + $0x20] sm:$0xff]
  %v217 = vld [vmem:[%s211 + $0x28] sm:$0xff]
  %v218 = vld [vmem:[%s211 + $0x30] sm:$0xff]
  %v219 = vld [vmem:[%s211 + $0x38] sm:$0xff]
  %v220 = vld [vmem:[%s211 + $0x40] sm:$0xff]
  %v221 = vld [vmem:[%s211 + $0x48] sm:$0xff]
  %v222 = vld [vmem:[%s211 + $0x50] sm:$0xff]
  %v223 = vld [vmem:[%s211 + $0x58] sm:$0xff]
  %v224 = vld [vmem:[%s211 + $0x60] sm:$0xff]
  %v225 = vld [vmem:[%s211 + $0x68] sm:$0xff]
  %v226 = vld [vmem:[%s211 + $0x70] sm:$0xff]
  %v227 = vld [vmem:[%s211 + $0x78] sm:$0xff]
  %v228 = vperm.slane %v210, 0
  %229 = vmatpush.msra.mxu0 %v227
  %230 = vmatpush.msra.mxu0 %v226
  %231 = vmatpush.msra.mxu0 %v225
  %232 = vmatpush.msra.mxu0 %v224
  %233 = vmatpush.msra.mxu0 %v223
  %234 = vmatpush.msra.mxu0 %v222
  %235 = vmatpush.msra.mxu0 %v221
  %236 = vmatpush.msra.mxu0 %v220
  %237 = vmatpush.msra.mxu0 %v219
  %238 = vmatpush.msra.mxu0 %v218
  %239 = vmatpush.msra.mxu0 %v217
  %240 = vmatpush.msra.mxu0 %v216
  %241 = vmatpush.msra.mxu0 %v215
  %242 = vmatpush.msra.mxu0 %v214
  %243 = vmatpush.msra.mxu0 %v213
  %244 = vmatpush.msra.mxu0 %v212
  %245 = vmatmul.f32.gmra.mxu0 %v204
  %v246 = vpop.f32.mrf.mxu0
  %v247 = vadd.f32 %v228, %v246
  %248 = vmatmul.f32.gmra.mxu0 %v207
  %v249 = vpop.f32.mrf.mxu0
  %v250 = vadd.f32 %v228, %v249
  %251 = vdwg.mxu0
  %v252 = vmax.f32 %v247, 0.0
  %v253 = vmax.f32 %v250, 0.0
  %s254 = scalar_lea.vmem %s3, 512
  %v255 = vld [vmem:[%s254] sm:$0xff]
  %v256 = vld [vmem:[%s254 + $0x8] sm:$0xff]
  %v257 = vld [vmem:[%s254 + $0x10] sm:$0xff]
  %v258 = vld [vmem:[%s254 + $0x18] sm:$0xff]
  %v259 = vld [vmem:[%s254 + $0x20] sm:$0xff]
  %v260 = vld [vmem:[%s254 + $0x28] sm:$0xff]
  %v261 = vld [vmem:[%s254 + $0x30] sm:$0xff]
  %v262 = vld [vmem:[%s254 + $0x38] sm:$0xff]
  %v263 = vld [vmem:[%s254 + $0x40] sm:$0xff]
  %v264 = vld [vmem:[%s254 + $0x48] sm:$0xff]
  %v265 = vld [vmem:[%s254 + $0x50] sm:$0xff]
  %v266 = vld [vmem:[%s254 + $0x58] sm:$0xff]
  %v267 = vld [vmem:[%s254 + $0x60] sm:$0xff]
  %v268 = vld [vmem:[%s254 + $0x68] sm:$0xff]
  %v269 = vld [vmem:[%s254 + $0x70] sm:$0xff]
  %v270 = vld [vmem:[%s254 + $0x78] sm:$0xff]
  %v271 = vperm.slane %v210, 1
  %272 = vmatpush.msra.mxu0 %v270
  %273 = vmatpush.msra.mxu0 %v269
  %274 = vmatpush.msra.mxu0 %v268
  %275 = vmatpush.msra.mxu0 %v267
  %276 = vmatpush.msra.mxu0 %v266
  %277 = vmatpush.msra.mxu0 %v265
  %278 = vmatpush.msra.mxu0 %v264
  %279 = vmatpush.msra.mxu0 %v263
  %280 = vmatpush.msra.mxu0 %v262
  %281 = vmatpush.msra.mxu0 %v261
  %282 = vmatpush.msra.mxu0 %v260
  %283 = vmatpush.msra.mxu0 %v259
  %284 = vmatpush.msra.mxu0 %v258
  %285 = vmatpush.msra.mxu0 %v257
  %286 = vmatpush.msra.mxu0 %v256
  %287 = vmatpush.msra.mxu0 %v255
  %288 = vmatmul.f32.gmra.mxu0 %v252
  %v289 = vpop.f32.mrf.mxu0
  %v290 = vadd.f32 %v271, %v289
  %291 = vmatmul.f32.gmra.mxu0 %v253
  %v292 = vpop.f32.mrf.mxu0
  %v293 = vadd.f32 %v271, %v292
  %294 = vdwg.mxu0
  %v295 = vmax.f32 %v290, 0.0
  %v296 = vmax.f32 %v293, 0.0
  %v297 = vadd.f32 %v295, %v296
  %v298 = vrot.slane %v297, 4
  %v299 = vadd.f32 %v297, %v298
  %v300 = vrot.slane %v299, 2
  %v301 = vadd.f32 %v299, %v300
  %v302 = vrot.slane %v301, 1
  %v303 = vadd.f32 %v301, %v302
  %v304 = vmul.f32 %v303, %v153
  %v305 = vsub.f32 %v295, %v304
  %v306 = vsub.f32 %v296, %v304
  %v307 = vmul.f32 %v305, %v305
  %v308 = vmul.f32 %v306, %v306
  %v309 = vadd.f32 %v307, %v308
  %v310 = vrot.slane %v309, 4
  %v311 = vadd.f32 %v309, %v310
  %v312 = vrot.slane %v311, 2
  %v313 = vadd.f32 %v311, %v312
  %v314 = vrot.slane %v313, 1
  %v315 = vadd.f32 %v313, %v314
  %v316 = vmul.f32 %v315, %v153
  %v317 = vperm.slane %v210, 2
  %v318 = vmul.f32 %v317, %v305
  %v319 = vmul.f32 %v317, %v306
  %v320 = vadd.f32 %v316, 1e-05
  %v321 = vrsqrt.pop %v320
  %v322 = vmul.f32 %v321, %v320
  %v323 = vmul.f32 %v322, %v321
  %v324 = vmul.f32 0.5, %v323
  %v325 = vsub.f32 1.5, %v324
  %v326 = vmul.f32 %v321, %v325
  %vm327 = vweird.f32 %v320
  %vm328 = vweird.f32 %v321
  %vm329 = vmor %vm327, %vm328
  %v330 = vsel %vm329, %v321, %v326
  %v331 = vmul.f32 %v318, %v330
  %v332 = vmul.f32 %v319, %v330
  %v333 = vperm.slane %v210, 3
  %v334 = vadd.f32 %v331, %v333
  %v335 = vadd.f32 %v332, %v333
  %336 = vmatpush.msra.mxu0 0.0
  %337 = vmatpush.msra.mxu0 0.0
  %338 = vmatpush.msra.mxu0 0.0
  %339 = vmatpush.msra.mxu0 0.0
  %340 = vmatpush.msra.mxu0 0.0
  %341 = vmatpush.msra.mxu0 0.0
  %342 = vmatpush.msra.mxu0 0.0
  %343 = vmatpush.msra.mxu0 0.0
  %344 = vmatpush.msra.mxu0 0.0
  %345 = vmatpush.msra.mxu0 0.0
  %346 = vmatpush.msra.mxu0 0.0
  %347 = vmatpush.msra.mxu0 0.0
  %348 = vmatpush.msra.mxu0 0.0
  %349 = vmatpush.msra.mxu0 0.0
  %350 = vmatpush.msra.mxu0 %v335
  %351 = vmatpush.msra.mxu0 %v334
  %352 = vmatmul.f32.gmra.mxu0 %v26
  %v353 = vpop.f32.mrf.mxu0
  %v354 = vadd.f32 0.0, %v353
  %355 = vmatmul.f32.gmra.mxu0 %v29
  %v356 = vpop.f32.mrf.mxu0
  %v357 = vadd.f32 0.0, %v356
  %358 = vdwg.mxu0
  %s359 = scalar_lea.vmem %s4, 16
  %v360 = vld [vmem:[%s359] sm:$0xff]
  %s361 = scalar_lea.vmem %s3, 256
  %v362 = vld [vmem:[%s361] sm:$0xff]
  %v363 = vld [vmem:[%s361 + $0x8] sm:$0xff]
  %v364 = vld [vmem:[%s361 + $0x10] sm:$0xff]
  %v365 = vld [vmem:[%s361 + $0x18] sm:$0xff]
  %v366 = vld [vmem:[%s361 + $0x20] sm:$0xff]
  %v367 = vld [vmem:[%s361 + $0x28] sm:$0xff]
  %v368 = vld [vmem:[%s361 + $0x30] sm:$0xff]
  %v369 = vld [vmem:[%s361 + $0x38] sm:$0xff]
  %v370 = vld [vmem:[%s361 + $0x40] sm:$0xff]
  %v371 = vld [vmem:[%s361 + $0x48] sm:$0xff]
  %v372 = vld [vmem:[%s361 + $0x50] sm:$0xff]
  %v373 = vld [vmem:[%s361 + $0x58] sm:$0xff]
  %v374 = vld [vmem:[%s361 + $0x60] sm:$0xff]
  %v375 = vld [vmem:[%s361 + $0x68] sm:$0xff]
  %v376 = vld [vmem:[%s361 + $0x70] sm:$0xff]
  %v377 = vld [vmem:[%s361 + $0x78] sm:$0xff]
  %v378 = vperm.slane %v360, 0
  %379 = vmatpush.msra.mxu0 %v377
  %380 = vmatpush.msra.mxu0 %v376
  %381 = vmatpush.msra.mxu0 %v375
  %382 = vmatpush.msra.mxu0 %v374
  %383 = vmatpush.msra.mxu0 %v373
  %384 = vmatpush.msra.mxu0 %v372
  %385 = vmatpush.msra.mxu0 %v371
  %386 = vmatpush.msra.mxu0 %v370
  %387 = vmatpush.msra.mxu0 %v369
  %388 = vmatpush.msra.mxu0 %v368
  %389 = vmatpush.msra.mxu0 %v367
  %390 = vmatpush.msra.mxu0 %v366
  %391 = vmatpush.msra.mxu0 %v365
  %392 = vmatpush.msra.mxu0 %v364
  %393 = vmatpush.msra.mxu0 %v363
  %394 = vmatpush.msra.mxu0 %v362
  %395 = vmatmul.f32.gmra.mxu0 %v354
  %v396 = vpop.f32.mrf.mxu0
  %v397 = vadd.f32 %v378, %v396
  %398 = vmatmul.f32.gmra.mxu0 %v357
  %v399 = vpop.f32.mrf.mxu0
  %v400 = vadd.f32 %v378, %v399
  %401 = vdwg.mxu0
  %v402 = vmax.f32 %v397, 0.0
  %v403 = vmax.f32 %v400, 0.0
  %s404 = scalar_lea.vmem %s3, 640
  %v405 = vld [vmem:[%s404] sm:$0xff]
  %v406 = vld [vmem:[%s404 + $0x8] sm:$0xff]
  %v407 = vld [vmem:[%s404 + $0x10] sm:$0xff]
  %v408 = vld [vmem:[%s404 + $0x18] sm:$0xff]
  %v409 = vld [vmem:[%s404 + $0x20] sm:$0xff]
  %v410 = vld [vmem:[%s404 + $0x28] sm:$0xff]
  %v411 = vld [vmem:[%s404 + $0x30] sm:$0xff]
  %v412 = vld [vmem:[%s404 + $0x38] sm:$0xff]
  %v413 = vld [vmem:[%s404 + $0x40] sm:$0xff]
  %v414 = vld [vmem:[%s404 + $0x48] sm:$0xff]
  %v415 = vld [vmem:[%s404 + $0x50] sm:$0xff]
  %v416 = vld [vmem:[%s404 + $0x58] sm:$0xff]
  %v417 = vld [vmem:[%s404 + $0x60] sm:$0xff]
  %v418 = vld [vmem:[%s404 + $0x68] sm:$0xff]
  %v419 = vld [vmem:[%s404 + $0x70] sm:$0xff]
  %v420 = vld [vmem:[%s404 + $0x78] sm:$0xff]
  %v421 = vperm.slane %v360, 1
  %422 = vmatpush.msra.mxu0 %v420
  %423 = vmatpush.msra.mxu0 %v419
  %424 = vmatpush.msra.mxu0 %v418
  %425 = vmatpush.msra.mxu0 %v417
  %426 = vmatpush.msra.mxu0 %v416
  %427 = vmatpush.msra.mxu0 %v415
  %428 = vmatpush.msra.mxu0 %v414
  %429 = vmatpush.msra.mxu0 %v413
  %430 = vmatpush.msra.mxu0 %v412
  %431 = vmatpush.msra.mxu0 %v411
  %432 = vmatpush.msra.mxu0 %v410
  %433 = vmatpush.msra.mxu0 %v409
  %434 = vmatpush.msra.mxu0 %v408
  %435 = vmatpush.msra.mxu0 %v407
  %436 = vmatpush.msra.mxu0 %v406
  %437 = vmatpush.msra.mxu0 %v405
  %438 = vmatmul.f32.gmra.mxu0 %v402
  %v439 = vpop.f32.mrf.mxu0
  %v440 = vadd.f32 %v421, %v439
  %441 = vmatmul.f32.gmra.mxu0 %v403
  %v442 = vpop.f32.mrf.mxu0
  %v443 = vadd.f32 %v421, %v442
  %444 = vdwg.mxu0
  %v445 = vmax.f32 %v440, 0.0
  %v446 = vmax.f32 %v443, 0.0
  %v447 = vadd.f32 %v445, %v446
  %v448 = vrot.slane %v447, 4
  %v449 = vadd.f32 %v447, %v448
  %v450 = vrot.slane %v449, 2
  %v451 = vadd.f32 %v449, %v450
  %v452 = vrot.slane %v451, 1
  %v453 = vadd.f32 %v451, %v452
  %v454 = vmul.f32 %v453, %v153
  %v455 = vsub.f32 %v445, %v454
  %v456 = vsub.f32 %v446, %v454
  %v457 = vmul.f32 %v455, %v455
  %v458 = vmul.f32 %v456, %v456
  %v459 = vadd.f32 %v457, %v458
  %v460 = vrot.slane %v459, 4
  %v461 = vadd.f32 %v459, %v460
  %v462 = vrot.slane %v461, 2
  %v463 = vadd.f32 %v461, %v462
  %v464 = vrot.slane %v463, 1
  %v465 = vadd.f32 %v463, %v464
  %v466 = vmul.f32 %v465, %v153
  %v467 = vperm.slane %v360, 2
  %v468 = vmul.f32 %v467, %v455
  %v469 = vmul.f32 %v467, %v456
  %v470 = vadd.f32 %v466, 1e-05
  %v471 = vrsqrt.pop %v470
  %v472 = vmul.f32 %v471, %v470
  %v473 = vmul.f32 %v472, %v471
  %v474 = vmul.f32 0.5, %v473
  %v475 = vsub.f32 1.5, %v474
  %v476 = vmul.f32 %v471, %v475
  %vm477 = vweird.f32 %v470
  %vm478 = vweird.f32 %v471
  %vm479 = vmor %vm477, %vm478
  %v480 = vsel %vm479, %v471, %v476
  %v481 = vmul.f32 %v468, %v480
  %v482 = vmul.f32 %v469, %v480
  %v483 = vperm.slane %v360, 3
  %v484 = vadd.f32 %v481, %v483
  %v485 = vadd.f32 %v482, %v483
  %v486 = vld [vmem:[%s2] sm:$0xff]
  %v488 = vsel %vm24, %v486, 0
  %490 = vmatpush.msra.mxu0 0.0
  %491 = vmatpush.msra.mxu0 0.0
  %492 = vmatpush.msra.mxu0 0.0
  %493 = vmatpush.msra.mxu0 0.0
  %494 = vmatpush.msra.mxu0 0.0
  %495 = vmatpush.msra.mxu0 0.0
  %496 = vmatpush.msra.mxu0 0.0
  %497 = vmatpush.msra.mxu0 0.0
  %498 = vmatpush.msra.mxu0 0.0
  %499 = vmatpush.msra.mxu0 0.0
  %500 = vmatpush.msra.mxu0 0.0
  %501 = vmatpush.msra.mxu0 0.0
  %502 = vmatpush.msra.mxu0 0.0
  %503 = vmatpush.msra.mxu0 0.0
  %504 = vmatpush.msra.mxu0 %v485
  %505 = vmatpush.msra.mxu0 %v484
  %506 = vmatmul.f32.gmra.mxu0 %v488
  %v507 = vpop.f32.mrf.mxu0
  %v508 = vadd.f32 0.0, %v507
  %509 = vdwg.mxu0
  %s510 = scalar_lea.vmem %s3, 768
  %v511 = vld [vmem:[%s510] sm:$0xff]
  %v512 = vld [vmem:[%s510 + $0x8] sm:$0xff]
  %v513 = vld [vmem:[%s510 + $0x10] sm:$0xff]
  %v514 = vld [vmem:[%s510 + $0x18] sm:$0xff]
  %v515 = vld [vmem:[%s510 + $0x20] sm:$0xff]
  %v516 = vld [vmem:[%s510 + $0x28] sm:$0xff]
  %v517 = vld [vmem:[%s510 + $0x30] sm:$0xff]
  %v518 = vld [vmem:[%s510 + $0x38] sm:$0xff]
  %v519 = vld [vmem:[%s510 + $0x40] sm:$0xff]
  %v520 = vld [vmem:[%s510 + $0x48] sm:$0xff]
  %v521 = vld [vmem:[%s510 + $0x50] sm:$0xff]
  %v522 = vld [vmem:[%s510 + $0x58] sm:$0xff]
  %v523 = vld [vmem:[%s510 + $0x60] sm:$0xff]
  %v524 = vld [vmem:[%s510 + $0x68] sm:$0xff]
  %v525 = vld [vmem:[%s510 + $0x70] sm:$0xff]
  %v526 = vld [vmem:[%s510 + $0x78] sm:$0xff]
  %s527 = scalar_lea.vmem %s4, 24
  %v528 = vld [vmem:[%s527] sm:$0xff]
  %v529 = vperm.slane %v528, 0
  %530 = vmatpush.msra.mxu0 %v526
  %531 = vmatpush.msra.mxu0 %v525
  %532 = vmatpush.msra.mxu0 %v524
  %533 = vmatpush.msra.mxu0 %v523
  %534 = vmatpush.msra.mxu0 %v522
  %535 = vmatpush.msra.mxu0 %v521
  %536 = vmatpush.msra.mxu0 %v520
  %537 = vmatpush.msra.mxu0 %v519
  %538 = vmatpush.msra.mxu0 %v518
  %539 = vmatpush.msra.mxu0 %v517
  %540 = vmatpush.msra.mxu0 %v516
  %541 = vmatpush.msra.mxu0 %v515
  %542 = vmatpush.msra.mxu0 %v514
  %543 = vmatpush.msra.mxu0 %v513
  %544 = vmatpush.msra.mxu0 %v512
  %545 = vmatpush.msra.mxu0 %v511
  %546 = vmatmul.f32.gmra.mxu0 %v508
  %v547 = vpop.f32.mrf.mxu0
  %v548 = vadd.f32 %v529, %v547
  %549 = vdwg.mxu0
  %v550 = vmax.f32 %v548, 0.0
  %551 = vst [vmem:[%s5] sm:$0xff] %v550
  // Predicated region
  $region22: #{gnn_drug_forward.1} parent=0 // pred_check
    _
  $region23: #{gnn_drug_forward.1} parent=0 // pred_check_branch
    %553 = sbr.rel (0) target = $region25
  $region24: #{gnn_drug_forward.1} parent=0 // pred_region
    _
  $region25: #{gnn_drug_forward.1} parent=0 // pred_fallthru
    _
  // Predicated region
  $region26: #{gnn_drug_forward.1} parent=0 // pred_check
    _
  $region27: #{gnn_drug_forward.1} parent=0 // pred_check_branch
    %555 = sbr.rel (0) target = $region29
  $region28: #{gnn_drug_forward.1} parent=0 // pred_region
    _
  $region29: #{gnn_drug_forward.1} parent=0 // pred_fallthru
    _

</llo_original>
